<compile_context>
chip_gen: v5e
topology: v5e:2x2
jax: 0.10.0
libtpu: 0.0.40
codegen_flags: <defaults>
</compile_context>

<pallas_src>
import numpy as np
import jax
import jax.numpy as jnp
from jax.experimental import pallas as pl
from jax.experimental.pallas import tpu as pltpu


def _build_pe_table(d_model: int, max_len: int = 28) -> jnp.ndarray:
    """Deterministic sin/cos positional-encoding table, shape (max_len, 1, d_model)."""
    position = np.arange(0, max_len, dtype=np.float32)[:, None]               # (max_len, 1)
    div_term = np.exp(np.arange(0, d_model, 2, dtype=np.float32)
                      * (-np.log(10000.0) / d_model))                          # (ceil(d/2),)
    pe = np.zeros((max_len, d_model), dtype=np.float32)
    pe[:, 0::2] = np.sin(position * div_term)
    # Truncation handles odd d_model; the classic PyTorch module assumes even d_model.
    pe[:, 1::2] = np.cos(position * div_term)[:, : d_model // 2]
    return jnp.asarray(pe[:, None, :])                                         # (max_len, 1, d_model)


def _pos_enc_kernel(x_ref, pe_ref, o_ref):
    # x_ref / o_ref: (ts, tb, D);  pe_ref: (ts, 1, D)  ->  sublane-broadcast add.
    o_ref[...] = x_ref[...] + pe_ref[...]


def _sublane_multiple(dtype) -> int:
    # Sublane packing of the second-minor dim: 8 for 4-byte, 16 for 2-byte, 32 for 1-byte.
    return max(8, 32 // jnp.dtype(dtype).itemsize)


def positional_encoding(x: jnp.ndarray, pe: jnp.ndarray,
                        *, target_block_bytes: int = 2 << 20) -> jnp.ndarray:
    """x: (S, B, D); pe: (max_len, 1, D). Returns x + pe[:S] (broadcast over batch)."""
    S, B, D = x.shape
    itemsize = jnp.dtype(x.dtype).itemsize
    pe3 = pe[:S].astype(x.dtype)                       # (S, 1, D) -- glue slice in plain JAX
    total_bytes = S * B * D * itemsize

    # ---------- small-input fast path: one block, no grid, no pipeline ----------
    if total_bytes <= target_block_bytes:
        return pl.pallas_call(
            _pos_enc_kernel,
            out_shape=jax.ShapeDtypeStruct((S, B, D), x.dtype),
        )(x, pe3)

    # ---------- tiled streaming path (grid over seq x batch) ----------
    sub = _sublane_multiple(x.dtype)
    full_s_batch_row = S * D * itemsize                # one batch element over the full seq
    tb_cand = target_block_bytes // max(full_s_batch_row, 1)
    if tb_cand >= sub:
        # Full seq per block; tile the batch axis (the common case: S <= 28).
        ts = S
        tb = min(B, (tb_cand // sub) * sub)
    else:
        # Even a sublane-wide batch tile over full S is too big: also tile seq.
        tb = min(B, sub)
        ts = max(1, min(S, target_block_bytes // max(tb * D * itemsize, 1)))
    # TODO(synk): an extremely wide d_model (a single (1, sub, D) block over the VMEM
    # budget) would additionally need a lane-axis grid over D; not needed for this module.

    grid = (pl.cdiv(S, ts), pl.cdiv(B, tb))            # batch is the inner (fast) axis

    blk_bytes = ts * tb * D * itemsize
    pe_blk_bytes = ts * D * itemsize
    vmem_need = 2 * (2 * blk_bytes + pe_blk_bytes)     # double-buffered x + out + pe
    vmem_limit = int(min(48 << 20, max(32 << 20, (vmem_need * 3) // 2)))

    return pl.pallas_call(
        _pos_enc_kernel,
        out_shape=jax.ShapeDtypeStruct((S, B, D), x.dtype),
        grid_spec=pltpu.PrefetchScalarGridSpec(
            num_scalar_prefetch=0,
            grid=grid,
            in_specs=[
                pl.BlockSpec((ts, tb, D), lambda i, j: (i, j, 0)),   # x tile
                pl.BlockSpec((ts, 1, D), lambda i, j: (i, 0, 0)),    # pe: re-DMA'd only when i changes
            ],
            out_specs=pl.BlockSpec((ts, tb, D), lambda i, j: (i, j, 0)),
        ),
        compiler_params=pltpu.CompilerParams(
            dimension_semantics=("parallel", "parallel"),            # both TCs stream tiles on v7x
            vmem_limit_bytes=vmem_limit,
        ),
        cost_estimate=pl.CostEstimate(
            flops=S * B * D,
            transcendentals=0,
            bytes_accessed=2 * total_bytes + S * D * itemsize,
        ),
    )(x, pe3)


if __name__ == "__main__":
    MAX_LEN = 28

    # Small shapes consistent with the module's forward: (seq, batch, d_model).
    S, B, D = 8, 2, 32
    key = jax.random.PRNGKey(0)
    x_small = jax.random.normal(key, (S, B, D), dtype=jnp.float32)
    pe_small = _build_pe_table(D, MAX_LEN)             # deterministic "parameter"

    ref_small = x_small + pe_small[:S]                 # plain-JAX reference (same math as PyTorch)
    out_small = jax.block_until_ready(positional_encoding(x_small, pe_small))
    assert out_small.shape == (S, B, D)
    np.testing.assert_allclose(np.asarray(out_small), np.asarray(ref_small),
                               rtol=1e-6, atol=1e-6)

    # A moderately larger slab to exercise the tiled (batch-gridded) path too.
    S2, B2, D2 = 28, 512, 128
    x_big = jax.random.normal(jax.random.PRNGKey(0), (S2, B2, D2), dtype=jnp.float32)
    pe_big = _build_pe_table(D2, MAX_LEN)
    ref_big = x_big + pe_big[:S2]
    out_big = jax.block_until_ready(positional_encoding(x_big, pe_big))
    np.testing.assert_allclose(np.asarray(out_big), np.asarray(ref_big),
                               rtol=1e-6, atol=1e-6)

    print("KERNEL_OK")
</pallas_src>

<mosaic_0001>
module attributes {stable_mosaic.version = 11 : i64} {
  func.func @_pos_enc_kernel(%arg0: memref<8x2x32xf32, #tpu.memory_space<vmem>>, %arg1: memref<8x1x32xf32, #tpu.memory_space<vmem>>, %arg2: memref<8x2x32xf32, #tpu.memory_space<vmem>>) attributes {dimension_semantics = [], scalar_prefetch = 0 : i64, scratch_operands = 0 : i64, tpu.core_type = #tpu.core_type<tc>} {
    %c0 = arith.constant 0 : index
    %c0_0 = arith.constant 0 : index
    %c0_1 = arith.constant 0 : index
    %0 = vector.load %arg0[%c0, %c0_0, %c0_1] : memref<8x2x32xf32, #tpu.memory_space<vmem>>, vector<8x2x32xf32>
    %c0_2 = arith.constant 0 : index
    %c0_3 = arith.constant 0 : index
    %c0_4 = arith.constant 0 : index
    %1 = vector.load %arg1[%c0_2, %c0_3, %c0_4] : memref<8x1x32xf32, #tpu.memory_space<vmem>>, vector<8x1x32xf32>
    %2 = vector.broadcast %1 : vector<8x1x32xf32> to vector<8x2x32xf32>
    %3 = arith.addf %0, %2 : vector<8x2x32xf32>
    %c0_5 = arith.constant 0 : index
    %c0_6 = arith.constant 0 : index
    %c0_7 = arith.constant 0 : index
    %4 = vector.load %arg2[%c0_5, %c0_6, %c0_7] : memref<8x2x32xf32, #tpu.memory_space<vmem>>, vector<8x2x32xf32>
    tpu.vector_store %arg2[%c0_5, %c0_6, %c0_7], %3 {strides = array<i32>} : memref<8x2x32xf32, #tpu.memory_space<vmem>>, vector<8x2x32xf32>,
    return
  }
}

</mosaic_0001>

<llo_original>
// kernel: tpu_custom_call.1
$region0: #{tpu_custom_call.1}
  #allocation0 [shape = 'u32[]', space=smem, size = 0x4, offset = 0x4, fixed_abs, tag = 'smem constant byte address 0x4 - core index']
  #allocation1 [shape = 'u32[72,128]{1,0:T(1,128)}', space=vmem, size = 0x9000, scoped, tag = 'internal scratch']
  %s0 = inlined_call_operand.hbm [shape: f32[8,2,32], index: 0, kind: input, shape index: {}]
  %s1 = inlined_call_operand.hbm [shape: f32[8,1,32], index: 1, kind: input, shape index: {}]
  %s2 = inlined_call_operand.hbm [shape: f32[8,2,32], index: 2, kind: output, shape index: {}]
  %s3 = sld [smem:[#allocation0]]
  $region26: #{tpu_custom_call.1} parent=0
    _
  %s5 = ssub.s32 1, %s3
  %s6 = scalar_select 0, %s5, %s3
  $region1: #{tpu_custom_call.1} parent=0
    #allocation2 [shape = 'u8[8192]{0}', space=vmem, size = 0x2000, scoped, tag = 'input window, operand 0, single buffered']
    #allocation3 [shape = 's32[1]{0}', space=sflag, size = 0x4, scoped, tag = 'scoped memory for tpu_custom_call.1']
    #allocation4 [shape = 's32[1]{0}', space=sflag, size = 0x4, scoped, tag = 'scoped memory for tpu_custom_call.1']
    #allocation5 [shape = 'u8[4096]{0}', space=vmem, size = 0x1000, scoped, tag = 'input window, operand 1, single buffered']
    #allocation6 [shape = 's32[1]{0}', space=sflag, size = 0x4, scoped, tag = 'scoped memory for tpu_custom_call.1']
    #allocation7 [shape = 'u8[8192]{0}', space=vmem, size = 0x2000, scoped, tag = 'output window, operand 0, single buffered']
    %7 = vsyncpa [#allocation3], 0
    %8 = vsyncpa [#allocation6], 0
    %9 = vsyncpa [#allocation4], 0
    // Predicated region
    $region2: #{tpu_custom_call.1} parent=1 // pred_check
      _
    $region3: #{tpu_custom_call.1} parent=1 // pred_check_branch
      %11 = sbr.rel (0) target = $region5
    $region4: #{tpu_custom_call.1} parent=1 // pred_region
      %13 = vsyncadd [#allocation3], 0
      %s14 = sshll.u32 %s0, 4
      %s15 = int_to_ptr.hbm [resolvable:$true] %s14
      %s16 = sshll.u32 [#allocation2], 4
      %s17 = int_to_ptr.vmem [resolvable:$true] %s16
      %22 = dma.hbm_to_vmem [thread:$0]  %s15, 256, %s17, [#allocation3], 32, 32, 2
    $region5: #{tpu_custom_call.1} parent=1 // pred_fallthru
      _
    // Predicated region
    $region6: #{tpu_custom_call.1} parent=1 // pred_check
      _
    $region7: #{tpu_custom_call.1} parent=1 // pred_check_branch
      %24 = sbr.rel (0) target = $region9
    $region8: #{tpu_custom_call.1} parent=1 // pred_region
      %26 = vsyncadd [#allocation6], 0
      %s27 = sshll.u32 %s1, 4
      %s28 = int_to_ptr.hbm [resolvable:$true] %s27
      %s29 = sshll.u32 [#allocation5], 4
      %s30 = int_to_ptr.vmem [resolvable:$true] %s29
      %35 = dma.hbm_to_vmem [thread:$0]  %s28, 128, %s30, [#allocation6], 16, 16, 1
    $region9: #{tpu_custom_call.1} parent=1 // pred_fallthru
      _
    // Predicated region
    $region10: #{tpu_custom_call.1} parent=1 // pred_check
      _
    $region11: #{tpu_custom_call.1} parent=1 // pred_check_branch
      %37 = sbr.rel (0) target = $region13
    $region12: #{tpu_custom_call.1} parent=1 // pred_region
      %39 = dma.done [#allocation3], 256
    $region13: #{tpu_custom_call.1} parent=1 // pred_fallthru
      _
    // Predicated region
    $region14: #{tpu_custom_call.1} parent=1 // pred_check
      _
    $region15: #{tpu_custom_call.1} parent=1 // pred_check_branch
      %41 = sbr.rel (0) target = $region17
    $region16: #{tpu_custom_call.1} parent=1 // pred_region
      %43 = dma.done [#allocation6], 128
    $region17: #{tpu_custom_call.1} parent=1 // pred_fallthru
      _
    %v44 = vld [vmem:[#allocation2] sm:$0x3]
    %v45 = vld [vmem:[#allocation2 + $0x2] sm:$0x3]
    %v46 = vld [vmem:[#allocation2 + $0x4] sm:$0x3]
    %v47 = vld [vmem:[#allocation2 + $0x6] sm:$0x3]
    %v48 = vld [vmem:[#allocation2 + $0x8] sm:$0x3]
    %v49 = vld [vmem:[#allocation2 + $0xa] sm:$0x3]
    %v50 = vld [vmem:[#allocation2 + $0xc] sm:$0x3]
    %v51 = vld [vmem:[#allocation2 + $0xe] sm:$0x3]
    %v52 = vld [vmem:[#allocation5] sm:$0x1]
    %v53 = vld [vmem:[#allocation5 + $0x1] sm:$0x1]
    %v54 = vld [vmem:[#allocation5 + $0x2] sm:$0x1]
    %v55 = vld [vmem:[#allocation5 + $0x3] sm:$0x1]
    %v56 = vld [vmem:[#allocation5 + $0x4] sm:$0x1]
    %v57 = vld [vmem:[#allocation5 + $0x5] sm:$0x1]
    %v58 = vld [vmem:[#allocation5 + $0x6] sm:$0x1]
    %v59 = vld [vmem:[#allocation5 + $0x7] sm:$0x1]
    %v68 = vperm.slane %v52, 0
    %v69 = vperm.slane %v53, 0
    %v70 = vperm.slane %v54, 0
    %v71 = vperm.slane %v55, 0
    %v72 = vperm.slane %v56, 0
    %v73 = vperm.slane %v57, 0
    %v74 = vperm.slane %v58, 0
    %v75 = vperm.slane %v59, 0
    %v84 = vadd.f32 %v44, %v68
    %v85 = vadd.f32 %v45, %v69
    %v86 = vadd.f32 %v46, %v70
    %v87 = vadd.f32 %v47, %v71
    %v88 = vadd.f32 %v48, %v72
    %v89 = vadd.f32 %v49, %v73
    %v90 = vadd.f32 %v50, %v74
    %v91 = vadd.f32 %v51, %v75
    %vm92 = vcmask 254976
    %93 = vst.msk [vmem:[#allocation7] sm:$0x3] %vm92, %v84
    %94 = vst.msk [vmem:[#allocation7 + $0x2] sm:$0x3] %vm92, %v85
    %95 = vst.msk [vmem:[#allocation7 + $0x4] sm:$0x3] %vm92, %v86
    %96 = vst.msk [vmem:[#allocation7 + $0x6] sm:$0x3] %vm92, %v87
    %97 = vst.msk [vmem:[#allocation7 + $0x8] sm:$0x3] %vm92, %v88
    %98 = vst.msk [vmem:[#allocation7 + $0xa] sm:$0x3] %vm92, %v89
    %99 = vst.msk [vmem:[#allocation7 + $0xc] sm:$0x3] %vm92, %v90
    %100 = vst.msk [vmem:[#allocation7 + $0xe] sm:$0x3] %vm92, %v91
    // Predicated region
    $region18: #{tpu_custom_call.1} parent=1 // pred_check
      _
    $region19: #{tpu_custom_call.1} parent=1 // pred_check_branch
      %102 = sbr.rel (0) target = $region21
    $region20: #{tpu_custom_call.1} parent=1 // pred_region
      %104 = vsyncadd [#allocation4], 0
      %s105 = sshll.u32 [#allocation7], 4
      %s106 = int_to_ptr.vmem [resolvable:$true] %s105
      %s107 = sshll.u32 %s2, 4
      %s108 = int_to_ptr.hbm [resolvable:$true] %s107
      %113 = dma.vmem_to_hbm [thread:$0]  %s106, 256, %s108, [#allocation4], 32, 32, 2
    $region21: #{tpu_custom_call.1} parent=1 // pred_fallthru
      _
    // Predicated region
    $region22: #{tpu_custom_call.1} parent=1 // pred_check
      _
    $region23: #{tpu_custom_call.1} parent=1 // pred_check_branch
      %115 = sbr.rel (0) target = $region25
    $region24: #{tpu_custom_call.1} parent=1 // pred_region
      %117 = dma.done [#allocation4], 256
    $region25: #{tpu_custom_call.1} parent=1 // pred_fallthru
      _
    %118 = vsyncpa [#allocation3], 1
    %119 = vsyncpa [#allocation6], 1
    %120 = vsyncpa [#allocation4], 1

</llo_original>
